<compile_context>
chip_gen: v6e
topology: v6e:2x2x1
jax: 0.10.0
libtpu: 0.0.40
codegen_flags: <defaults>
</compile_context>

<pallas_src>
import functools

import jax
import jax.numpy as jnp
from jax.experimental import pallas as pl
from jax.experimental.pallas import tpu as pltpu


def _layernorm_kernel(x_ref, gamma_ref, beta_ref, o_ref, *, eps, d_model):
    # x_ref: (tile_rows, d_model) block in VMEM; gamma/beta: (1, d_model) f32 (pre-cast).
    x = x_ref[...].astype(jnp.float32)
    mean = jnp.mean(x, axis=-1, keepdims=True)
    diff = x - mean
    # torch.Tensor.std defaults to the unbiased estimator (ddof=1).
    var = jnp.sum(diff * diff, axis=-1, keepdims=True) * jnp.float32(1.0 / (d_model - 1))
    std = jnp.sqrt(var)
    # NOTE: reference divides by (std + eps), not sqrt(var + eps).
    # Compute the reciprocal on the narrow (tile_rows, 1) column, then broadcast-multiply,
    # instead of a full (tile_rows, d_model) divide.
    inv = 1.0 / (std + jnp.float32(eps))
    normalized = diff * inv
    out = gamma_ref[...] * normalized + beta_ref[...]
    o_ref[...] = out.astype(o_ref.dtype)


def _pick_tile_rows(rows, d_model, dtype):
    """Largest row tile that keeps the double-buffered VMEM footprint modest on all gens."""
    itemsize = jnp.dtype(dtype).itemsize
    # Sublane packing: 8 for 32-bit, 16 for bf16/f16, 32 for int8/fp8.
    sublane = {4: 8, 2: 16, 1: 32}.get(itemsize, 8)
    # Budget for the pipelined blocks: 2x double-buffered input + 2x double-buffered
    # output blocks must stay well under the smallest scoped-VMEM default (16 MiB on v5e,
    # 32 MiB on v6e/v7x, 64 MiB physical on v7x).  8 MiB total leaves ample headroom.
    budget_bytes = 8 * 1024 * 1024
    bytes_per_row = max(d_model * itemsize, 1)
    max_rows = budget_bytes // (4 * bytes_per_row)   # 4 live blocks (2 in + 2 out)
    tile = min(1024, max(max_rows, sublane))
    tile = (tile // sublane) * sublane
    tile = max(tile, sublane)
    if tile >= rows:
        return rows  # full-extent block is always legal (and the demo shapes are tiny)
    return tile


def layer_norm(x, gamma, beta, *, eps=1e-5, tile_rows=None):
    """LayerNorm over the last axis of x, matching the PyTorch reference module."""
    orig_shape = x.shape
    d_model = orig_shape[-1]
    rows = 1
    for s in orig_shape[:-1]:
        rows *= s
    x2 = x.reshape(rows, d_model)

    if beta is None:
        beta = jnp.zeros((d_model,), dtype=jnp.float32)

    # Pre-cast gamma/beta to f32 once in the wrapper (they stay VMEM-resident across
    # grid steps since their index_map is constant), so the kernel does no per-tile cast.
    gamma2 = gamma.astype(jnp.float32).reshape(1, d_model)
    beta2 = beta.astype(jnp.float32).reshape(1, d_model)

    if tile_rows is None:
        tile_rows = _pick_tile_rows(rows, d_model, x.dtype)
    else:
        tile_rows = min(tile_rows, rows)

    # Ragged last block handled by Pallas (padded reads / masked writes); per-row
    # reductions are along the lane axis only, so padded rows never contaminate valid rows.
    grid = (pl.cdiv(rows, tile_rows),)

    kernel = functools.partial(_layernorm_kernel, eps=eps, d_model=d_model)

    out2 = pl.pallas_call(
        kernel,
        out_shape=jax.ShapeDtypeStruct((rows, d_model), x.dtype),
        grid_spec=pltpu.PrefetchScalarGridSpec(
            num_scalar_prefetch=0,
            grid=grid,
            in_specs=[
                pl.BlockSpec((tile_rows, d_model), lambda i: (i, 0)),
                pl.BlockSpec((1, d_model), lambda i: (0, 0)),
                pl.BlockSpec((1, d_model), lambda i: (0, 0)),
            ],
            out_specs=pl.BlockSpec((tile_rows, d_model), lambda i: (i, 0)),
        ),
        compiler_params=pltpu.CompilerParams(
            dimension_semantics=("parallel",)
        ),
    )(x2, gamma2, beta2)

    # TODO(synk): if production d_model < 128, fold k rows into the lane axis and do
    # segmented reductions to avoid masked (lane-sparse) loads/stores.
    return out2.reshape(orig_shape)


def _reference_layer_norm(x, gamma, beta, eps=1e-5):
    x32 = x.astype(jnp.float32)
    mean = jnp.mean(x32, axis=-1, keepdims=True)
    std = jnp.std(x32, axis=-1, keepdims=True, ddof=1)
    normalized = (x32 - mean) / (std + eps)
    out = gamma * normalized
    if beta is not None:
        out = out + beta
    return out.astype(x.dtype)


if __name__ == "__main__":
    key = jax.random.PRNGKey(0)
    batch, seq, d_model = 2, 8, 32

    x = jax.random.normal(key, (batch, seq, d_model), dtype=jnp.float32)

    # Deterministic parameter init matching nn.Parameter defaults in __init__
    gamma = jnp.ones((d_model,), dtype=jnp.float32)
    beta = jnp.zeros((d_model,), dtype=jnp.float32)

    out = layer_norm(x, gamma, beta, eps=1e-5)
    out = jax.block_until_ready(out)

    ref = _reference_layer_norm(x, gamma, beta, eps=1e-5)
    assert out.shape == x.shape
    assert jnp.allclose(out, ref, atol=1e-5, rtol=1e-5), "mismatch vs reference"

    print("KERNEL_OK")
</pallas_src>

<mosaic_0001>
module attributes {stable_mosaic.version = 11 : i64} {
  func.func @_layernorm_kernel(%arg0: i32, %arg1: memref<16x32xf32, #tpu.memory_space<vmem>>, %arg2: memref<1x32xf32, #tpu.memory_space<vmem>>, %arg3: memref<1x32xf32, #tpu.memory_space<vmem>>, %arg4: memref<16x32xf32, #tpu.memory_space<vmem>>) attributes {dimension_semantics = [#tpu.dimension_semantics<parallel>], iteration_bounds = array<i64: 1>, scalar_prefetch = 0 : i64, scratch_operands = 0 : i64, tpu.core_type = #tpu.core_type<tc>, window_params = [{transform_indices = @transform_0, window_bounds = array<i64: 16, 32>}, {pipeline_mode = #tpu.pipeline_mode<synchronous>, transform_indices = @transform_1, window_bounds = array<i64: 1, 32>}, {pipeline_mode = #tpu.pipeline_mode<synchronous>, transform_indices = @transform_2, window_bounds = array<i64: 1, 32>}, {transform_indices = @transform_3, window_bounds = array<i64: 16, 32>}]} {
    %c0 = arith.constant 0 : index
    %c0_0 = arith.constant 0 : index
    %0 = vector.load %arg1[%c0, %c0_0] : memref<16x32xf32, #tpu.memory_space<vmem>>, vector<16x32xf32>
    %cst = arith.constant dense<0.000000e+00> : vector<16xf32>
    %1 = vector.multi_reduction <add>, %0, %cst [1] : vector<16x32xf32> to vector<16xf32>
    %2 = vector.shape_cast %1 : vector<16xf32> to vector<16x1xf32>
    %cst_1 = arith.constant 3.200000e+01 : f32
    %3 = vector.broadcast %cst_1 : f32 to vector<16x1xf32>
    %4 = arith.divf %2, %3 : vector<16x1xf32>
    %5 = vector.broadcast %4 : vector<16x1xf32> to vector<16x32xf32>
    %6 = arith.subf %0, %5 : vector<16x32xf32>
    %7 = arith.mulf %6, %6 : vector<16x32xf32>
    %cst_2 = arith.constant dense<0.000000e+00> : vector<16xf32>
    %8 = vector.multi_reduction <add>, %7, %cst_2 [1] : vector<16x32xf32> to vector<16xf32>
    %9 = vector.shape_cast %8 : vector<16xf32> to vector<16x1xf32>
    %cst_3 = arith.constant 0.0322580636 : f32
    %10 = vector.broadcast %cst_3 : f32 to vector<16x1xf32>
    %11 = arith.mulf %9, %10 : vector<16x1xf32>
    %12 = math.sqrt %11 : vector<16x1xf32>
    %cst_4 = arith.constant 9.99999974E-6 : f32
    %13 = vector.broadcast %cst_4 : f32 to vector<16x1xf32>
    %14 = arith.addf %12, %13 : vector<16x1xf32>
    %cst_5 = arith.constant 1.000000e+00 : f32
    %15 = vector.broadcast %cst_5 : f32 to vector<16x1xf32>
    %16 = arith.divf %15, %14 : vector<16x1xf32>
    %17 = vector.broadcast %16 : vector<16x1xf32> to vector<16x32xf32>
    %18 = arith.mulf %6, %17 : vector<16x32xf32>
    %c0_6 = arith.constant 0 : index
    %c0_7 = arith.constant 0 : index
    %19 = vector.load %arg2[%c0_6, %c0_7] : memref<1x32xf32, #tpu.memory_space<vmem>>, vector<1x32xf32>
    %20 = vector.broadcast %19 : vector<1x32xf32> to vector<16x32xf32>
    %21 = arith.mulf %20, %18 : vector<16x32xf32>
    %c0_8 = arith.constant 0 : index
    %c0_9 = arith.constant 0 : index
    %22 = vector.load %arg3[%c0_8, %c0_9] : memref<1x32xf32, #tpu.memory_space<vmem>>, vector<1x32xf32>
    %23 = vector.broadcast %22 : vector<1x32xf32> to vector<16x32xf32>
    %24 = arith.addf %21, %23 : vector<16x32xf32>
    %c0_10 = arith.constant 0 : index
    %c0_11 = arith.constant 0 : index
    %25 = vector.load %arg4[%c0_10, %c0_11] : memref<16x32xf32, #tpu.memory_space<vmem>>, vector<16x32xf32>
    tpu.vector_store %arg4[%c0_10, %c0_11], %24 {strides = array<i32>} : memref<16x32xf32, #tpu.memory_space<vmem>>, vector<16x32xf32>,
    return
  }
  func.func @transform_0(%arg0: i32) -> (i32, i32) {
    %c0_i32 = arith.constant 0 : i32
    %c0_i32_0 = arith.constant 0 : i32
    return %arg0, %c0_i32 : i32, i32
  }
  func.func @transform_1(%arg0: i32) -> (i32, i32) {
    %c0_i32 = arith.constant 0 : i32
    %c0_i32_0 = arith.constant 0 : i32
    %c0_i32_1 = arith.constant 0 : i32
    return %c0_i32, %c0_i32_0 : i32, i32
  }
  func.func @transform_2(%arg0: i32) -> (i32, i32) {
    %c0_i32 = arith.constant 0 : i32
    %c0_i32_0 = arith.constant 0 : i32
    %c0_i32_1 = arith.constant 0 : i32
    return %c0_i32, %c0_i32_0 : i32, i32
  }
  func.func @transform_3(%arg0: i32) -> (i32, i32) {
    %c0_i32 = arith.constant 0 : i32
    %c0_i32_0 = arith.constant 0 : i32
    return %arg0, %c0_i32 : i32, i32
  }
}

</mosaic_0001>

<llo_original>
// kernel: tpu_custom_call.1
$region0: #{tpu_custom_call.1}
  #allocation0 [shape = 'u32[]', space=smem, size = 0x4, offset = 0x4, fixed_abs, tag = 'smem constant byte address 0x4 - core index']
  #allocation1 [shape = 'u32[144,128]{1,0:T(1,128)}', space=vmem, size = 0x12000, scoped, tag = 'internal scratch']
  %s0 = inlined_call_operand.hbm [shape: f32[16,32], index: 0, kind: input, shape index: {}]
  %s1 = inlined_call_operand.vmem [shape: f32[1,32], index: 1, kind: input, shape index: {}]
  %s2 = inlined_call_operand.vmem [shape: f32[1,32], index: 2, kind: input, shape index: {}]
  %s3 = inlined_call_operand.hbm [shape: f32[16,32], index: 3, kind: output, shape index: {}]
  %s4 = sld [smem:[#allocation0]]
  $region26: #{tpu_custom_call.1} parent=0
    _
  %s6 = ssub.s32 1, %s4
  %s7 = scalar_select 0, %s6, %s4
  $region1: #{tpu_custom_call.1} parent=0
    #allocation2 [shape = 'u8[8192]{0}', space=vmem, size = 0x2000, scoped, tag = 'input window, operand 0, single buffered']
    #allocation3 [shape = 's32[1]{0}', space=sflag, size = 0x4, scoped, tag = 'scoped memory for tpu_custom_call.1']
    #allocation4 [shape = 's32[1]{0}', space=sflag, size = 0x4, scoped, tag = 'scoped memory for tpu_custom_call.1']
    #allocation5 [shape = 'u8[8192]{0}', space=vmem, size = 0x2000, scoped, tag = 'output window, operand 0, single buffered']
    %8 = vsyncpa [#allocation3], 0
    %9 = vsyncpa [#allocation4], 0
    // Predicated region
    $region2: #{tpu_custom_call.1} parent=1 // pred_check
      _
    $region3: #{tpu_custom_call.1} parent=1 // pred_check_branch
      %11 = sbr.rel (0) target = $region5
    $region4: #{tpu_custom_call.1} parent=1 // pred_region
      %s13 = ssub.s32 256, 256
      %14 = vsyncadd [#allocation3], %s13
      %s15 = sshll.u32 [#allocation2], 4
      %s16 = int_to_ptr.vmem [resolvable:$true] %s15
      %21 = dma.hbm_to_vmem [thread:$0]  %s0, 256, %s16, [#allocation3], 128, 128, 8
    $region5: #{tpu_custom_call.1} parent=1 // pred_fallthru
      _
    // Predicated region
    $region6: #{tpu_custom_call.1} parent=1 // pred_check
      _
    $region7: #{tpu_custom_call.1} parent=1 // pred_check_branch
      %23 = sbr.rel (0) target = $region9
    $region8: #{tpu_custom_call.1} parent=1 // pred_region
      _
    $region9: #{tpu_custom_call.1} parent=1 // pred_fallthru
      _
    // Predicated region
    $region10: #{tpu_custom_call.1} parent=1 // pred_check
      _
    $region11: #{tpu_custom_call.1} parent=1 // pred_check_branch
      %25 = sbr.rel (0) target = $region13
    $region12: #{tpu_custom_call.1} parent=1 // pred_region
      _
    $region13: #{tpu_custom_call.1} parent=1 // pred_fallthru
      _
    // Predicated region
    $region14: #{tpu_custom_call.1} parent=1 // pred_check
      _
    $region15: #{tpu_custom_call.1} parent=1 // pred_check_branch
      %27 = sbr.rel (0) target = $region17
    $region16: #{tpu_custom_call.1} parent=1 // pred_region
      %28 = dma.done [#allocation3], 256
    $region17: #{tpu_custom_call.1} parent=1 // pred_fallthru
      _
    %v29 = vld [vmem:[#allocation2] sm:$0xff]
    %v30 = vld [vmem:[#allocation2 + $0x8] sm:$0xff]
    %vm31 = vcmask 261120
    %v32 = vsel %vm31, %v29, 0.0
    %33 = vadd.xlane.f32.xlu0 %v32
    %v34 = vpop.xlane.xlu0 %33
    %v35 = vsel %vm31, %v30, 0.0
    %36 = vadd.xlane.f32.xlu0 %v35
    %v37 = vpop.xlane.xlu0 %36
    %v38 = vrcp.pop 32.0
    %v39 = vmul.f32 %v34, %v38
    %v40 = vmul.f32 %v37, %v38
    %v41 = vsub.f32 %v29, %v39
    %v42 = vsub.f32 %v30, %v40
    %v43 = vmul.f32 %v41, %v41
    %v44 = vmul.f32 %v42, %v42
    %v45 = vsel %vm31, %v43, 0.0
    %46 = vadd.xlane.f32.xlu0 %v45
    %v47 = vpop.xlane.xlu0 %46
    %v48 = vsel %vm31, %v44, 0.0
    %49 = vadd.xlane.f32.xlu0 %v48
    %v50 = vpop.xlane.xlu0 %49
    %v51 = vmul.f32 %v47, 0.032258064
    %v52 = vmul.f32 %v50, 0.032258064
    %v53 = vrsqrt.pop %v51
    %v54 = vmul.f32 %v51, %v53
    %vm55 = vcmp.eq.f32.partialorder %v51, inf
    %v56 = vsel %vm55, %v51, %v54
    %vm57 = vcmp.eq.f32.partialorder %v51, 0.0
    %v58 = vand.u32 %v51, 2147483648
    %v59 = vsel %vm57, %v58, %v56
    %v60 = vrsqrt.pop %v52
    %v61 = vmul.f32 %v52, %v60
    %vm62 = vcmp.eq.f32.partialorder %v52, inf
    %v63 = vsel %vm62, %v52, %v61
    %vm64 = vcmp.eq.f32.partialorder %v52, 0.0
    %v65 = vand.u32 %v52, 2147483648
    %v66 = vsel %vm64, %v65, %v63
    %v67 = vadd.f32 %v59, 1e-05
    %v68 = vadd.f32 %v66, 1e-05
    %v69 = vrcp.pop %v67
    %v70 = vmul.f32 1.0, %v69
    %v71 = vrcp.pop %v68
    %v72 = vmul.f32 1.0, %v71
    %v73 = vmul.f32 %v41, %v70
    %v74 = vmul.f32 %v42, %v72
    %v75 = vld [vmem:[%s1] sm:$0x1]
    %v77 = vlaneseq
    %v78 = vshrl.u32 %v77, 7
    %v79 = vsub.s32 0, %v78
    %v80 = vrot.slane %v75, %v79
    %v82 = vmul.f32 %v80, %v73
    %v83 = vmul.f32 %v80, %v74
    %v84 = vld [vmem:[%s2] sm:$0x1]
    %v86 = vlaneseq
    %v87 = vshrl.u32 %v86, 7
    %v88 = vsub.s32 0, %v87
    %v89 = vrot.slane %v84, %v88
    %v91 = vadd.f32 %v82, %v89
    %v92 = vadd.f32 %v83, %v89
    %93 = vst.msk [vmem:[#allocation5] sm:$0xff] %vm31, %v91
    %94 = vst.msk [vmem:[#allocation5 + $0x8] sm:$0xff] %vm31, %v92
    // Predicated region
    $region18: #{tpu_custom_call.1} parent=1 // pred_check
      _
    $region19: #{tpu_custom_call.1} parent=1 // pred_check_branch
      %96 = sbr.rel (0) target = $region21
    $region20: #{tpu_custom_call.1} parent=1 // pred_region
      %s98 = ssub.s32 256, 256
      %99 = vsyncadd [#allocation4], %s98
      %s100 = sshll.u32 [#allocation5], 4
      %s101 = int_to_ptr.vmem [resolvable:$true] %s100
      %106 = dma.vmem_to_hbm [thread:$0]  %s101, 256, %s3, [#allocation4], 128, 128, 8
    $region21: #{tpu_custom_call.1} parent=1 // pred_fallthru
      _
    // Predicated region
    $region22: #{tpu_custom_call.1} parent=1 // pred_check
      _
    $region23: #{tpu_custom_call.1} parent=1 // pred_check_branch
      %108 = sbr.rel (0) target = $region25
    $region24: #{tpu_custom_call.1} parent=1 // pred_region
      %109 = dma.done [#allocation4], 256
    $region25: #{tpu_custom_call.1} parent=1 // pred_fallthru
      _
    %110 = vsyncpa [#allocation3], 1
    %111 = vsyncpa [#allocation4], 1

</llo_original>
